<compile_context>
chip_gen: v6e
topology: v6e:2x2x1
jax: 0.10.0
libtpu: 0.0.40
codegen_flags: <defaults>
</compile_context>

<pallas_src>
from functools import partial

import jax
import jax.numpy as jnp
from jax.experimental import pallas as pl
from jax.experimental.pallas import tpu as pltpu

_MIB = 1024 * 1024


def _round_up(x, m):
    return ((x + m - 1) // m) * m


def _patch_embed_kernel(w_ref, p_ref, b_ref, o_ref):
    """One (E-tile, batch-slice) step of the fused patch-embedding projection.

    w_ref: (tn, K)   compute dtype  weight rows (resident across the batch axis)
    p_ref: (K, nHW)  compute dtype  patch pixels for one (B*T) slice
    b_ref: (tn, 1)   f32            bias column
    o_ref: (tn, nHW) out dtype      output block, already channel-major (NCHW)
    """
    acc = jnp.dot(w_ref[...], p_ref[...], preferred_element_type=jnp.float32)
    o_ref[...] = (acc + b_ref[...]).astype(o_ref.dtype)


def _working_set_bytes(K, nHW, tn, in_b, w_b, out_b):
    # Double-buffered tiles + f32 accumulator/store staging.
    return (2 * K * nHW * in_b          # patches block
            + 2 * tn * K * w_b          # weight block (counted x2 even if resident)
            + 2 * tn * 4                # bias block
            + 2 * tn * nHW * out_b      # output block
            + 2 * tn * nHW * 4)         # f32 accumulator staging


def _fused_projection(w_ek, patches_t, bias_col, *, tn, out_dtype, vmem_limit):
    """w_ek: (E_pad, K); patches_t: (BT, K, nHW); bias_col: (E_pad, 1) -> (BT, E_pad, nHW)."""
    E_pad, K = w_ek.shape
    BT, _, nHW = patches_t.shape
    assert E_pad % tn == 0
    n_j = E_pad // tn
    in_b = patches_t.dtype.itemsize
    w_b = w_ek.dtype.itemsize
    out_b = jnp.dtype(out_dtype).itemsize

    cost = pl.CostEstimate(
        flops=2 * BT * nHW * K * E_pad,
        transcendentals=0,
        bytes_accessed=(n_j * BT * K * nHW * in_b     # patches re-streamed per E tile
                        + K * E_pad * w_b             # weight fetched once (E axis outer)
                        + E_pad * 4
                        + BT * E_pad * nHW * out_b),
    )

    return pl.pallas_call(
        _patch_embed_kernel,
        out_shape=jax.ShapeDtypeStruct((BT, E_pad, nHW), out_dtype),
        grid_spec=pltpu.PrefetchScalarGridSpec(
            num_scalar_prefetch=0,
            # E-tile axis OUTER so the weight block index is constant across the
            # inner batch sweep -> Pallas skips its re-DMA (fetched exactly once
            # total when n_j == 1, i.e. full weight residency).
            grid=(n_j, BT),
            in_specs=[
                pl.BlockSpec((tn, K), lambda j, bt: (j, 0)),             # weight
                pl.BlockSpec((None, K, nHW), lambda j, bt: (bt, 0, 0)),  # patches
                pl.BlockSpec((tn, 1), lambda j, bt: (j, 0)),             # bias
            ],
            out_specs=pl.BlockSpec((None, tn, nHW), lambda j, bt: (bt, j, 0)),
        ),
        compiler_params=pltpu.CompilerParams(
            dimension_semantics=("parallel", "parallel"),
            vmem_limit_bytes=vmem_limit,
        ),
        cost_estimate=cost,
    )(w_ek, patches_t, bias_col)


@partial(jax.jit, static_argnames=("patch_size", "time_span", "compute_dtype", "out_dtype"))
def patch_embed_time_series_forward(x, weight, bias, *, patch_size, time_span,
                                    compute_dtype=jnp.bfloat16, out_dtype=None):
    """x: (B, C, H, W); weight: (E, Cin, ps, ps); bias: (E,) -> (B*T, E, H/ps, W/ps) NCHW.

    compute_dtype=jnp.float32 gives full-precision parity with PyTorch's f32
    Conv2d; the default bf16 uses bf16 MXU operands with f32 accumulation.
    out_dtype=None keeps the input dtype (PyTorch-like behaviour).
    """
    B, C, H, W = x.shape
    assert C % time_span == 0, "Total channels must be divisible by time_span."
    cin = C // time_span
    E = weight.shape[0]
    ps = patch_size
    assert H % ps == 0 and W % ps == 0
    nH, nW = H // ps, W // ps
    nHW = nH * nW
    BT = B * time_span
    K = cin * ps * ps
    if out_dtype is None:
        out_dtype = x.dtype

    in_b = jnp.dtype(compute_dtype).itemsize
    w_b = in_b
    out_b = jnp.dtype(out_dtype).itemsize

    # --- generation-aware VMEM budget --------------------------------------
    try:
        vmem_cap = int(pltpu.get_tpu_info().vmem_capacity_bytes)
    except Exception:  # interpret mode / info unavailable: assume v7x's 64 MiB
        vmem_cap = 64 * _MIB
    budget = max(int(0.7 * vmem_cap), 16 * _MIB)

    # --- E tiling: full weight residency whenever it fits ------------------
    if _working_set_bytes(K, nHW, E, in_b, w_b, out_b) <= budget:
        tn, E_pad = E, E                        # whole weight slab resident in VMEM
    else:
        tn, E_pad = 128, _round_up(E, 128)      # last resort
        for cand in (512, 256):                 # prefer wide tiles; pad E up to match
            if _working_set_bytes(K, nHW, cand, in_b, w_b, out_b) <= budget:
                tn, E_pad = cand, _round_up(E, cand)
                break

    ws = _working_set_bytes(K, nHW, tn, in_b, w_b, out_b)
    vmem_limit = int(min(max(ws + 4 * _MIB, 24 * _MIB),
                         max(vmem_cap - 8 * _MIB, 16 * _MIB)))

    # --- patch extraction (pure layout; one fused XLA HBM pass) ------------
    # (BT, cin, nH, ps, nW, ps) -> (BT, cin, ps, ps, nH, nW) -> (BT, K, nHW)
    # K flattens (cin, kh, kw) row-major to match weight.reshape(E, K); nHW
    # flattens (nH, nW) row-major to match the NCHW output reshape below.
    # TODO(synk): move this relayout into the kernel once small N-D relayouts
    #             lower robustly in Mosaic; keep this XLA path as fallback.
    xr = x.reshape(BT, cin, nH, ps, nW, ps)
    xr = jnp.transpose(xr, (0, 1, 3, 5, 2, 4))
    patches_t = xr.reshape(BT, K, nHW).astype(compute_dtype)

    # Tiny parameter tensors: PyTorch OIHW weight flattens directly to (E, K).
    # Padded weight rows / bias entries are zero -> padded outputs are zero and
    # get sliced off below.
    w_ek = weight.reshape(E, K).astype(compute_dtype)
    bias_col = bias.astype(jnp.float32).reshape(E, 1)
    if E_pad != E:
        w_ek = jnp.pad(w_ek, ((0, E_pad - E), (0, 0)))
        bias_col = jnp.pad(bias_col, ((0, E_pad - E), (0, 0)))

    out3 = _fused_projection(w_ek, patches_t, bias_col,
                             tn=tn, out_dtype=out_dtype, vmem_limit=vmem_limit)
    if E_pad != E:
        out3 = out3[:, :E, :]                  # contiguous slice, no transpose pass
    return out3.reshape(BT, E, nH, nW)         # free reshape: already NCHW


if __name__ == "__main__":
    # Small config consistent with the module.
    B, in_chans, H, W = 2, 4, 16, 16
    time_span = 2
    patch_size = 4
    embed_dim = 32
    cin = in_chans // time_span

    key = jax.random.PRNGKey(0)
    kx, kw, kb = jax.random.split(key, 3)
    x = jax.random.normal(kx, (B, in_chans, H, W), dtype=jnp.float32)
    weight = 0.02 * jax.random.normal(
        kw, (embed_dim, cin, patch_size, patch_size), dtype=jnp.float32)
    bias = 0.01 * jax.random.normal(kb, (embed_dim,), dtype=jnp.float32)

    out = patch_embed_time_series_forward(
        x, weight, bias, patch_size=patch_size, time_span=time_span)
    out = jax.block_until_ready(out)

    # Reference: XLA conv with the same bf16 operand rounding + f32 accumulation.
    x_ref = x.reshape(B * time_span, cin, H, W).astype(jnp.bfloat16)
    w_ref = weight.astype(jnp.bfloat16)
    ref = jax.lax.conv_general_dilated(
        x_ref, w_ref, window_strides=(patch_size, patch_size), padding="VALID",
        dimension_numbers=("NCHW", "OIHW", "NCHW"),
        preferred_element_type=jnp.float32) + bias.reshape(1, -1, 1, 1)

    assert out.shape == (B * time_span, embed_dim, H // patch_size, W // patch_size)
    assert jnp.allclose(out, ref, atol=1e-3, rtol=1e-3)

    print("KERNEL_OK")
</pallas_src>

<mosaic_0001>
module attributes {stable_mosaic.version = 11 : i64} {
  func.func @_patch_embed_kernel(%arg0: i32, %arg1: i32, %arg2: memref<32x32xbf16, #tpu.memory_space<vmem>>, %arg3: memref<1x32x16xbf16, #tpu.memory_space<vmem>>, %arg4: memref<32x1xf32, #tpu.memory_space<vmem>>, %arg5: memref<1x32x16xf32, #tpu.memory_space<vmem>>) attributes {dimension_semantics = [#tpu.dimension_semantics<parallel>, #tpu.dimension_semantics<parallel>], iteration_bounds = array<i64: 1, 4>, scalar_prefetch = 0 : i64, scratch_operands = 0 : i64, tpu.core_type = #tpu.core_type<tc>, window_params = [{transform_indices = @transform_0, window_bounds = array<i64: 32, 32>}, {transform_indices = @transform_1, window_bounds = array<i64: 1, 32, 16>}, {transform_indices = @transform_2, window_bounds = array<i64: 32, 1>}, {transform_indices = @transform_3, window_bounds = array<i64: 1, 32, 16>}]} {
    %c0 = arith.constant 0 : index
    %c0_0 = arith.constant 0 : index
    %0 = vector.load %arg2[%c0, %c0_0] : memref<32x32xbf16, #tpu.memory_space<vmem>>, vector<32x32xbf16>
    %c0_1 = arith.constant 0 : index
    %c0_2 = arith.constant 0 : index
    %c0_3 = arith.constant 0 : index
    %1 = vector.load %arg3[%c0_1, %c0_2, %c0_3] : memref<1x32x16xbf16, #tpu.memory_space<vmem>>, vector<1x32x16xbf16>
    %2 = vector.shape_cast %1 : vector<1x32x16xbf16> to vector<32x16xbf16>
    %cst = arith.constant dense<0.000000e+00> : vector<32x16xf32>
    %3 = tpu.matmul %0, %2, %cst {dimension_numbers = #tpu.dot_dimension_numbers<[1], [0], [0], [1], [0, 0, 1, 1], [], []>} : vector<32x32xbf16>, vector<32x16xbf16>, vector<32x16xf32> -> vector<32x16xf32>
    %c0_4 = arith.constant 0 : index
    %c0_5 = arith.constant 0 : index
    %4 = vector.load %arg4[%c0_4, %c0_5] : memref<32x1xf32, #tpu.memory_space<vmem>>, vector<32x1xf32>
    %5 = vector.broadcast %4 : vector<32x1xf32> to vector<32x16xf32>
    %6 = arith.addf %3, %5 : vector<32x16xf32>
    %c0_6 = arith.constant 0 : index
    %c0_7 = arith.constant 0 : index
    %c0_8 = arith.constant 0 : index
    %7 = vector.load %arg5[%c0_6, %c0_7, %c0_8] : memref<1x32x16xf32, #tpu.memory_space<vmem>>, vector<1x32x16xf32>
    %8 = vector.shape_cast %7 : vector<1x32x16xf32> to vector<32x16xf32>
    %9 = vector.shape_cast %6 : vector<32x16xf32> to vector<1x32x16xf32>
    tpu.vector_store %arg5[%c0_6, %c0_7, %c0_8], %9 {strides = array<i32>} : memref<1x32x16xf32, #tpu.memory_space<vmem>>, vector<1x32x16xf32>,
    return
  }
  func.func @transform_0(%arg0: i32, %arg1: i32) -> (i32, i32) {
    %c0_i32 = arith.constant 0 : i32
    %c0_i32_0 = arith.constant 0 : i32
    return %arg0, %c0_i32 : i32, i32
  }
  func.func @transform_1(%arg0: i32, %arg1: i32) -> (i32, i32, i32) {
    %c0_i32 = arith.constant 0 : i32
    %c0_i32_0 = arith.constant 0 : i32
    %c0_i32_1 = arith.constant 0 : i32
    return %arg1, %c0_i32, %c0_i32_0 : i32, i32, i32
  }
  func.func @transform_2(%arg0: i32, %arg1: i32) -> (i32, i32) {
    %c0_i32 = arith.constant 0 : i32
    %c0_i32_0 = arith.constant 0 : i32
    return %arg0, %c0_i32 : i32, i32
  }
  func.func @transform_3(%arg0: i32, %arg1: i32) -> (i32, i32, i32) {
    %c0_i32 = arith.constant 0 : i32
    %c0_i32_0 = arith.constant 0 : i32
    return %arg1, %arg0, %c0_i32 : i32, i32, i32
  }
}

</mosaic_0001>

<llo_original>
// kernel: patch_embed_time_series_forward.1
$region0: #{patch_embed_time_series_forward.1}
  #allocation0 [shape = 'u32[]', space=smem, size = 0x4, offset = 0x4, fixed_abs, tag = 'smem constant byte address 0x4 - core index']
  #allocation1 [shape = 'u32[144,128]{1,0:T(1,128)}', space=vmem, size = 0x12000, scoped, tag = 'internal scratch']
  %s0 = inlined_call_operand.vmem [shape: bf16[32,32], index: 0, kind: input, shape index: {}]
  %s1 = inlined_call_operand.vmem [shape: bf16[4,32,16], index: 1, kind: input, shape index: {}]
  %s2 = inlined_call_operand.vmem [shape: f32[32,1], index: 2, kind: input, shape index: {}]
  %s3 = inlined_call_operand.vmem [shape: f32[4,32,16], index: 3, kind: output, shape index: {}]
  %s4 = sld [smem:[#allocation0]]
  $region45: #{patch_embed_time_series_forward.1} parent=0
    _
  %s6 = ssub.s32 1, %s4
  %s7 = scalar_select 0, %s6, %s4
  loop: start=0, step=1, limit=6
  $region2: #{patch_embed_time_series_forward.1} parent=0 // loop_pre_header
    _
  $region3: #{patch_embed_time_series_forward.1} parent=0 // loop_header
    %s9 = sphi 0, %s13
    %p10 = scmp.ge.s32.totalorder %s9, 6
    %s16 = sphi 0, %s28
    %s17 = sphi 0, %s24
    %s18 = sphi 0, %s16
    %s19 = sphi 0, %s17
    %s20 = sphi 0, %s18
    %s21 = sphi 0, %s19
    %s31 = sphi 0, %s33
    %s34 = sphi 0, %s31
    %s35 = sphi 0, %s34
    %s51 = sphi 0, %s35
    %s57 = sphi 0, %s59
    %s60 = sphi 0, %s57
    %s61 = sphi 0, %s60
    %s77 = sphi 0, %s61
    %s83 = sphi 0, %s85
    %s86 = sphi 0, %s83
    %s87 = sphi 0, %s86
    %s103 = sphi 0, %s87
    %s111 = sphi 0, %s113
    %s114 = sphi 0, %s111
    %s115 = sphi 0, %s114
    %s131 = sphi 0, %s115
  $region4: #{patch_embed_time_series_forward.1} parent=0 // loop_header_branch
    %12 = sbr.rel (%p10) target = $region8
  $region5: #{patch_embed_time_series_forward.1} parent=0 // loop_body
    %s14 = ssub.s32 %s9, 1
    %s15 = ssub.s32 %s9, 2
    %s22 = sadd.s32 1, %s17
    %p23 = scmp.ge.s32.totalorder %s22, 4
    %s24 = scalar_select %p23, 0, %s22
    %s25 = sadd.s32 1, %s16
    %s26 = scalar_select %p23, %s25, %s16
    %p27 = scmp.ge.s32.totalorder %s26, 1
    %s28 = scalar_select %p27, 0, %s26
    %s29 = ssub.s32 %s16, %s28
    %p30 = scmp.eq.s32.totalorder %s29, 0
    %s32 = sadd.s32 %s31, 1
    %s33 = scalar_select %p30, %s31, %s32
    %p36 = pneg %p30
    %p37 = scmp.eq.s32.totalorder %s9, 3
    %p38 = por %p36, %p37
    %p39 = scmp.ne.s32.totalorder %s31, %s34
    %p40 = scmp.eq.s32.totalorder %s9, 0
    %p41 = por %p39, %p40
    %p42 = scmp.ne.s32.totalorder %s31, %s34
    %p43 = scmp.eq.s32.totalorder %s14, 3
    %p44 = por %p42, %p43
    %p45 = scmp.ne.s32.totalorder %s34, %s35
    %p46 = scmp.eq.s32.totalorder %s14, 0
    %p47 = por %p45, %p46
    %p48 = scmp.ne.s32.totalorder %s34, %s35
    %p49 = scmp.eq.s32.totalorder %s15, 3
    %p50 = por %p48, %p49
    %p52 = scmp.ne.s32.totalorder %s35, %s51
    %p53 = scmp.eq.s32.totalorder %s15, 0
    %p54 = por %p52, %p53
    %s55 = ssub.s32 %s17, %s24
    %p56 = scmp.eq.s32.totalorder %s55, 0
    %s58 = sadd.s32 %s57, 1
    %s59 = scalar_select %p56, %s57, %s58
    %p62 = pneg %p56
    %p63 = scmp.eq.s32.totalorder %s9, 3
    %p64 = por %p62, %p63
    %p65 = scmp.ne.s32.totalorder %s57, %s60
    %p66 = scmp.eq.s32.totalorder %s9, 0
    %p67 = por %p65, %p66
    %p68 = scmp.ne.s32.totalorder %s57, %s60
    %p69 = scmp.eq.s32.totalorder %s14, 3
    %p70 = por %p68, %p69
    %p71 = scmp.ne.s32.totalorder %s60, %s61
    %p72 = scmp.eq.s32.totalorder %s14, 0
    %p73 = por %p71, %p72
    %p74 = scmp.ne.s32.totalorder %s60, %s61
    %p75 = scmp.eq.s32.totalorder %s15, 3
    %p76 = por %p74, %p75
    %p78 = scmp.ne.s32.totalorder %s61, %s77
    %p79 = scmp.eq.s32.totalorder %s15, 0
    %p80 = por %p78, %p79
    %s81 = ssub.s32 %s16, %s28
    %p82 = scmp.eq.s32.totalorder %s81, 0
    %s84 = sadd.s32 %s83, 1
    %s85 = scalar_select %p82, %s83, %s84
    %p88 = pneg %p82
    %p89 = scmp.eq.s32.totalorder %s9, 3
    %p90 = por %p88, %p89
    %p91 = scmp.ne.s32.totalorder %s83, %s86
    %p92 = scmp.eq.s32.totalorder %s9, 0
    %p93 = por %p91, %p92
    %p94 = scmp.ne.s32.totalorder %s83, %s86
    %p95 = scmp.eq.s32.totalorder %s14, 3
    %p96 = por %p94, %p95
    %p97 = scmp.ne.s32.totalorder %s86, %s87
    %p98 = scmp.eq.s32.totalorder %s14, 0
    %p99 = por %p97, %p98
    %p100 = scmp.ne.s32.totalorder %s86, %s87
    %p101 = scmp.eq.s32.totalorder %s15, 3
    %p102 = por %p100, %p101
    %p104 = scmp.ne.s32.totalorder %s87, %s103
    %p105 = scmp.eq.s32.totalorder %s15, 0
    %p106 = por %p104, %p105
    %s107 = ssub.s32 %s17, %s24
    %s108 = ssub.s32 %s16, %s28
    %s109 = sor.u32 %s107, %s108
    %p110 = scmp.eq.s32.totalorder %s109, 0
    %s112 = sadd.s32 %s111, 1
    %s113 = scalar_select %p110, %s111, %s112
    %p116 = pneg %p110
    %p117 = scmp.eq.s32.totalorder %s9, 3
    %p118 = por %p116, %p117
    %p119 = scmp.ne.s32.totalorder %s111, %s114
    %p120 = scmp.eq.s32.totalorder %s9, 0
    %p121 = por %p119, %p120
    %p122 = scmp.ne.s32.totalorder %s111, %s114
    %p123 = scmp.eq.s32.totalorder %s14, 3
    %p124 = por %p122, %p123
    %p125 = scmp.ne.s32.totalorder %s114, %s115
    %p126 = scmp.eq.s32.totalorder %s14, 0
    %p127 = por %p125, %p126
    %p128 = scmp.ne.s32.totalorder %s114, %s115
    %p129 = scmp.eq.s32.totalorder %s15, 3
    %p130 = por %p128, %p129
    %p132 = scmp.ne.s32.totalorder %s115, %s131
    %p133 = scmp.eq.s32.totalorder %s15, 0
    %p134 = por %p132, %p133
    %p135 = scmp.le.s32.totalorder 1, %s9
    %p136 = scmp.lt.s32.totalorder %s9, 5
    %p137 = pnand %p135, %p136
    %p138 = pneg %p137
    // Predicated region
    $region9: #{patch_embed_time_series_forward.1} parent=5 // pred_check
      _
    $region10: #{patch_embed_time_series_forward.1} parent=5 // pred_check_branch
      %140 = sbr.rel (%p137) target = $region12
    $region11: #{patch_embed_time_series_forward.1} parent=5 // pred_region
      %s141 = ssub.s32 %s9, 1
      // Predicated region
      $region13: #{patch_embed_time_series_forward.1} parent=11 // pred_check
        %p142 = pneg %p47
      $region14: #{patch_embed_time_series_forward.1} parent=11 // pred_check_branch
        %144 = sbr.rel (%p142) target = $region16
      $region15: #{patch_embed_time_series_forward.1} parent=11 // pred_region
        %s145 = smul.u32 4, %s18
        %p146 = scmp.lt.s32.totalorder %s145, 3
        %s147 = scalar_select %p146, %s145, 3
        %s148 = smul.addr %s147, 4
        %s149 = scalar_lea.vmem %s0, %s148
        %s150 = smul.u32 4, %s18
      $region16: #{patch_embed_time_series_forward.1} parent=11 // pred_fallthru
        _
      // Predicated region
      $region17: #{patch_embed_time_series_forward.1} parent=11 // pred_check
        %p151 = pneg %p99
      $region18: #{patch_embed_time_series_forward.1} parent=11 // pred_check_branch
        %153 = sbr.rel (%p151) target = $region20
      $region19: #{patch_embed_time_series_forward.1} parent=11 // pred_region
        %s154 = smul.u32 4, %s18
        %p155 = scmp.lt.s32.totalorder %s154, 3
        %s156 = scalar_select %p155, %s154, 3
        %s157 = smul.addr %s156, 8
        %s158 = scalar_lea.vmem %s2, %s157
        %s159 = smul.u32 4, %s18
      $region20: #{patch_embed_time_series_forward.1} parent=11 // pred_fallthru
        _
    $region12: #{patch_embed_time_series_forward.1} parent=5 // pred_fallthru
      _
    %p160 = scmp.lt.s32.totalorder %s9, 4
    // Predicated region
    $region21: #{patch_embed_time_series_forward.1} parent=5 // pred_check
      %p161 = pneg %p160
    $region22: #{patch_embed_time_series_forward.1} parent=5 // pred_check_branch
      %163 = sbr.rel (%p161) target = $region24
    $region23: #{patch_embed_time_series_forward.1} parent=5 // pred_region
      // Predicated region
      $region25: #{patch_embed_time_series_forward.1} parent=23 // pred_check
        %p164 = pneg %p67
      $region26: #{patch_embed_time_series_forward.1} parent=23 // pred_check_branch
        %166 = sbr.rel (%p164) target = $region28
      $region27: #{patch_embed_time_series_forward.1} parent=23 // pred_region
        %p167 = scmp.lt.s32.totalorder %s17, 3
        %s168 = scalar_select %p167, %s17, 3
        %s169 = smul.addr %s168, 4
        %s170 = smul.addr %s169, 4
        %s171 = scalar_lea.vmem %s1, %s170
      $region28: #{patch_embed_time_series_forward.1} parent=23 // pred_fallthru
        _
    $region24: #{patch_embed_time_series_forward.1} parent=5 // pred_fallthru
      _
    %p172 = scmp.le.s32.totalorder 1, %s9
    %p173 = scmp.lt.s32.totalorder %s9, 5
    %p174 = pnand %p172, %p173
    %p175 = pneg %p174
    // Predicated region
    $region29: #{patch_embed_time_series_forward.1} parent=5 // pred_check
      _
    $region30: #{patch_embed_time_series_forward.1} parent=5 // pred_check_branch
      %177 = sbr.rel (%p174) target = $region32
    $region31: #{patch_embed_time_series_forward.1} parent=5 // pred_region
      %s178 = ssub.s32 %s9, 1
      %s179 = smul.u32 4, %s18
      %p180 = scmp.lt.s32.totalorder %s179, 3
      %s181 = scalar_select %p180, %s179, 3
      %s182 = smul.addr %s181, 4
      %s183 = scalar_lea.vmem %s0, %s182
      %p184 = pneg %p47
      %p185 = pneg %p44
      %p186 = scmp.lt.s32.totalorder %s19, 3
      %s187 = scalar_select %p186, %s19, 3
      %s188 = smul.addr %s187, 4
      %s189 = smul.addr %s188, 4
      %s190 = scalar_lea.vmem %s1, %s189
      %p191 = pneg %p73
      %p192 = pneg %p70
      %s193 = smul.u32 4, %s18
      %p194 = scmp.lt.s32.totalorder %s193, 3
      %s195 = scalar_select %p194, %s193, 3
      %s196 = smul.addr %s195, 8
      %s197 = scalar_lea.vmem %s2, %s196
      %p198 = pneg %p99
      %p199 = pneg %p96
      %p200 = pneg %p127
      %p201 = pneg %p124
      %s202 = smul.u32 4, %s18
      %p203 = scmp.lt.s32.totalorder %s19, 3
      %s204 = scalar_select %p203, %s19, 3
      %p205 = scmp.lt.s32.totalorder %s202, 3
      %s206 = scalar_select %p205, %s202, 3
      %s207 = smul.addr %s204, 4
      %s208 = sadd.s32 %s206, %s207
      %s209 = smul.addr %s208, 8
      %s210 = scalar_lea.vmem %s3, %s209
      %s211 = smul.u32 4, %s18
      %p212 = scmp.lt.s32.totalorder %s211, 3
      %s213 = scalar_select %p212, %s211, 3
      %s214 = smul.addr %s213, 4
      %s215 = scalar_lea.vmem %s0, %s214
      %s216 = smul.u32 4, %s18
      %p217 = scmp.lt.s32.totalorder %s19, 3
      %s218 = scalar_select %p217, %s19, 3
      %s219 = smul.addr %s218, 4
      %s220 = smul.addr %s219, 4
      %s221 = scalar_lea.vmem %s1, %s220
      %s222 = smul.u32 4, %s18
      %p223 = scmp.lt.s32.totalorder %s222, 3
      %s224 = scalar_select %p223, %s222, 3
      %s225 = smul.addr %s224, 8
      %s226 = scalar_lea.vmem %s2, %s225
      %s227 = smul.u32 4, %s18
      %s228 = smul.u32 4, %s18
      %p229 = scmp.lt.s32.totalorder %s19, 3
      %s230 = scalar_select %p229, %s19, 3
      %p231 = scmp.lt.s32.totalorder %s228, 3
      %s232 = scalar_select %p231, %s228, 3
      %s233 = smul.addr %s230, 4
      %s234 = sadd.s32 %s232, %s233
      %s235 = smul.addr %s234, 8
      %s236 = scalar_lea.vmem %s3, %s235
      %s237 = smul.u32 4, %s18
      %v239 = vld [vmem:[%s215] sm:$0xf]
      %v240 = vld [vmem:[%s215 + $0x4] sm:$0xf]
      %v241 = vld [vmem:[%s215 + $0x8] sm:$0xf]
      %v242 = vld [vmem:[%s215 + $0xc] sm:$0xf]
      %v243 = vld [vmem:[%s221] sm:$0xf]
      %v244 = vld [vmem:[%s221 + $0x4] sm:$0xf]
      %v245 = vld [vmem:[%s221 + $0x8] sm:$0xf]
      %v246 = vld [vmem:[%s221 + $0xc] sm:$0xf]
      %v247 = vld [vmem:[%s226] sm:$0xff]
      %v248 = vld [vmem:[%s226 + $0x8] sm:$0xff]
      %v249 = vld [vmem:[%s226 + $0x10] sm:$0xff]
      %v250 = vld [vmem:[%s226 + $0x18] sm:$0xff]
      %252 = vset.pattern.permute.xlu0 0
      %253 = vperm.xlu0 %252, %v247
      %v254 = vpop.permute.xlu0 %253
      %257 = vset.pattern.permute.xlu0 0
      %258 = vperm.xlu0 %257, %v248
      %v259 = vpop.permute.xlu0 %258
      %262 = vset.pattern.permute.xlu0 0
      %263 = vperm.xlu0 %262, %v249
      %v264 = vpop.permute.xlu0 %263
      %267 = vset.pattern.permute.xlu0 0
      %268 = vperm.xlu0 %267, %v250
      %v269 = vpop.permute.xlu0 %268
      %v275 = vunpack.c.l.b16 %v239
      %v276 = vunpack.c.l.b16 %v240
      %v277 = vunpack.c.l.b16 %v241
      %v278 = vunpack.c.l.b16 %v242
      %v279 = vpack.c.b16 %v276, %v275
      %v280 = vpack.c.b16 %v278, %v277
      %v285 = vunpack.c.l.b16 %v243
      %v286 = vunpack.c.l.b16 %v244
      %v287 = vunpack.c.l.b16 %v245
      %v288 = vunpack.c.l.b16 %v246
      %v289 = vpack.c.b16 %v286, %v285
      %v290 = vpack.c.b16 %v288, %v287
      %vm293 = vcmask 261120
      %v295 = vsel %vm293, %v279, 0
      %v298 = vsel %vm293, %v280, 0
      %300 = vmatprep.subr.bf16.mxu0 0
      %301 = vmatpush1.bf16.msra.mxu0 0
      %302 = vmatprep.subr.bf16.mxu0 0
      %303 = vmatpush1.bf16.msra.mxu0 0
      %304 = vmatprep.subr.bf16.mxu0 0
      %305 = vmatpush1.bf16.msra.mxu0 0
      %306 = vmatprep.subr.bf16.mxu0 0
      %307 = vmatpush1.bf16.msra.mxu0 0
      %308 = vmatprep.subr.bf16.mxu0 0
      %309 = vmatpush1.bf16.msra.mxu0 0
      %310 = vmatprep.subr.bf16.mxu0 0
      %311 = vmatpush1.bf16.msra.mxu0 0
      %312 = vmatprep.subr.bf16.mxu0 0
      %313 = vmatpush1.bf16.msra.mxu0 %v290
      %314 = vmatprep.subr.bf16.mxu0 0
      %315 = vmatpush1.bf16.msra.mxu0 %v289
      %316 = vmatprep.subr.bf16.mxu0 0
      %317 = vmatpush2.bf16.msra.mxu0 0
      %318 = vmatprep.subr.bf16.mxu0 0
      %319 = vmatpush2.bf16.msra.mxu0 0
      %320 = vmatprep.subr.bf16.mxu0 0
      %321 = vmatpush2.bf16.msra.mxu0 0
      %322 = vmatprep.subr.bf16.mxu0 0
      %323 = vmatpush2.bf16.msra.mxu0 0
      %324 = vmatprep.subr.bf16.mxu0 0
      %325 = vmatpush2.bf16.msra.mxu0 0
      %326 = vmatprep.subr.bf16.mxu0 0
      %327 = vmatpush2.bf16.msra.mxu0 0
      %328 = vmatprep.subr.bf16.mxu0 0
      %329 = vmatpush2.bf16.msra.mxu0 0
      %330 = vmatprep.subr.bf16.mxu0 0
      %331 = vmatpush2.bf16.msra.mxu0 0
      %332 = vmatprep.mubr.bf16.mxu0 0
      %333 = vmatmul.mubr.bf16.gmra.mxu0 %v295
      %v334 = vpop.f32.mrf.mxu0
      %v335 = vadd.f32 %v254, %v334
      %v336 = vpop.f32.mrf.mxu0
      %v337 = vpop.f32.mrf.mxu0
      %v338 = vadd.f32 %v259, %v337
      %v339 = vpop.f32.mrf.mxu0
      %340 = vmatprep.mubr.bf16.mxu0 0
      %341 = vmatmul.mubr.bf16.gmra.mxu0 %v298
      %v342 = vpop.f32.mrf.mxu0
      %v343 = vadd.f32 %v264, %v342
      %v344 = vpop.f32.mrf.mxu0
      %v345 = vpop.f32.mrf.mxu0
      %v346 = vadd.f32 %v269, %v345
      %v347 = vpop.f32.mrf.mxu0
      %348 = vdwg.mxu0
      %vm349 = vcmask 130048
      %350 = vst.msk [vmem:[%s236] sm:$0xff] %vm349, %v335
      %351 = vst.msk [vmem:[%s236 + $0x8] sm:$0xff] %vm349, %v338
      %352 = vst.msk [vmem:[%s236 + $0x10] sm:$0xff] %vm349, %v343
      %353 = vst.msk [vmem:[%s236 + $0x18] sm:$0xff] %vm349, %v346
      %s354 = smul.u32 4, %s18
      %p355 = scmp.lt.s32.totalorder %s19, 3
      %s356 = scalar_select %p355, %s19, 3
      %p357 = scmp.lt.s32.totalorder %s354, 3
      %s358 = scalar_select %p357, %s354, 3
      %s359 = smul.addr %s356, 4
      %s360 = sadd.s32 %s358, %s359
      %s361 = smul.addr %s360, 8
      %s362 = scalar_lea.vmem %s3, %s361
      // Predicated region
      $region33: #{patch_embed_time_series_forward.1} parent=31 // pred_check
        %p363 = pneg %p124
      $region34: #{patch_embed_time_series_forward.1} parent=31 // pred_check_branch
        %365 = sbr.rel (%p363) target = $region36
      $region35: #{patch_embed_time_series_forward.1} parent=31 // pred_region
        %s366 = smul.u32 4, %s18
      $region36: #{patch_embed_time_series_forward.1} parent=31 // pred_fallthru
        _
    $region32: #{patch_embed_time_series_forward.1} parent=5 // pred_fallthru
      _
    %p367 = scmp.le.s32.totalorder 2, %s9
    // Predicated region
    $region37: #{patch_embed_time_series_forward.1} parent=5 // pred_check
      %p368 = pneg %p367
    $region38: #{patch_embed_time_series_forward.1} parent=5 // pred_check_branch
      %370 = sbr.rel (%p368) target = $region40
    $region39: #{patch_embed_time_series_forward.1} parent=5 // pred_region
      %s371 = ssub.s32 %s9, 2
      // Predicated region
      $region41: #{patch_embed_time_series_forward.1} parent=39 // pred_check
        %p372 = pneg %p130
      $region42: #{patch_embed_time_series_forward.1} parent=39 // pred_check_branch
        %374 = sbr.rel (%p372) target = $region44
      $region43: #{patch_embed_time_series_forward.1} parent=39 // pred_region
        %s375 = smul.u32 4, %s20
        %p376 = scmp.lt.s32.totalorder %s21, 3
        %s377 = scalar_select %p376, %s21, 3
        %p378 = scmp.lt.s32.totalorder %s375, 3
        %s379 = scalar_select %p378, %s375, 3
        %s380 = smul.addr %s377, 4
        %s381 = sadd.s32 %s379, %s380
        %s382 = smul.addr %s381, 8
        %s383 = scalar_lea.vmem %s3, %s382
      $region44: #{patch_embed_time_series_forward.1} parent=39 // pred_fallthru
        _
    $region40: #{patch_embed_time_series_forward.1} parent=5 // pred_fallthru
      _
  $region6: #{patch_embed_time_series_forward.1} parent=0 // loop_footer
    %s13 = sadd.s32 1, %s9
  $region7: #{patch_embed_time_series_forward.1} parent=0 // loop_footer_branch
    %8 = sbr.rel target = $region3
  $region8: #{patch_embed_time_series_forward.1} parent=0 // loop_exit
    _

</llo_original>
